<compile_context>
chip_gen: v5e
topology: v5e:2x2
jax: 0.10.0
libtpu: 0.0.40
codegen_flags: <defaults>
</compile_context>

<pallas_src>
import jax
import jax.numpy as jnp
from jax.experimental import pallas as pl
from jax.experimental.pallas import tpu as pltpu


def composite_kernel(x_ref, p_ref, y_ref):
    # x_ref: (TB, D) batch tile (auto double-buffered by BlockSpec pipelining)
    # p_ref: (2, D)  row 0 = fused scale, row 1 = fused shift (f32, VMEM-resident)
    # y_ref: (TB, D) cascaded output tile
    scale = p_ref[0:1, :]                               # (1, D), broadcasts over rows
    shift = p_ref[1:2, :]
    x = x_ref[...].astype(jnp.float32)
    # Hot path: one FMA per element (VPU), lane-dense (TB, D) store.
    y_ref[...] = (x * scale + shift).astype(y_ref.dtype)


def _pick_tile_rows(B, row_bytes, *, target_block_bytes=6 << 20,
                    min_block_bytes=512 << 10, min_steps=8):
    """Rows per block: big enough to amortize per-step pipeline overhead
    (~0.35 us), small enough to keep >= min_steps grid steps (megacore) and
    to keep the double-buffered footprint far under v7x's 64 MiB VMEM."""
    if B <= 8:
        return B                                        # full-dim block is legal

    def rows_for(nbytes):
        return max(8, (nbytes // row_bytes) // 8 * 8)

    tb = rows_for(target_block_bytes)                   # byte-budget choice
    tb_split = max(8, (-(-B // min_steps) + 7) // 8 * 8)  # ~B/min_steps, mult of 8
    tb = min(tb, max(tb_split, rows_for(min_block_bytes)))
    return max(8, min(tb, (B // 8) * 8))                # never exceed the batch


def composite_transform(x, log_scales, shifts):
    """Forward pass of CompositeTransform over K elementwise-affine transforms.

    Returns (outputs, total_logabsdet) matching the PyTorch module's forward.
    """
    B, D = x.shape
    K, _ = log_scales.shape

    # --- Fold the cascade of K affine transforms into one affine (wrapper,
    # O(K*D) — never touches the (B, D) data, so it is not a pre-scale of x):
    #   y = x * prod_k exp(ls_k) + sum_k sh_k * prod_{j>k} exp(ls_j)
    scale_tot = jnp.ones((D,), jnp.float32)
    shift_tot = jnp.zeros((D,), jnp.float32)
    for k in range(K):                                  # K small, static unroll
        s_k = jnp.exp(log_scales[k].astype(jnp.float32))
        shift_tot = shift_tot * s_k + shifts[k].astype(jnp.float32)
        scale_tot = scale_tot * s_k
    params = jnp.stack([scale_tot, shift_tot], axis=0)  # (2, D) f32, one input

    itemsize = jnp.dtype(x.dtype).itemsize
    row_bytes = D * itemsize
    TB = _pick_tile_rows(B, row_bytes)
    grid = (pl.cdiv(B, TB),)                            # partial last block OK

    # 2x(in) + 2x(out) double-buffered blocks + params; leave a few MiB slack.
    # Kept <= 48 MiB so it also fits v7x's 64 MiB VMEM; raised above the 16 MiB
    # v5e default so bigger tiles don't trip the scoped limit.
    pipeline_bytes = 4 * TB * row_bytes + 2 * D * 4
    vmem_limit = int(min(48 << 20, max(32 << 20, pipeline_bytes + (4 << 20))))

    # TODO(synk): if D % 128 != 0, repack the (B, D) slab so the output last
    # dim is a lane multiple (masked vst.msk partial stores otherwise).
    y = pl.pallas_call(
        composite_kernel,
        grid=grid,
        in_specs=[
            pl.BlockSpec((TB, D), lambda i: (i, 0)),    # batch tile (pipelined)
            pl.BlockSpec((2, D), lambda i: (0, 0)),     # fused params, resident
        ],
        out_specs=pl.BlockSpec((TB, D), lambda i: (i, 0)),
        out_shape=jax.ShapeDtypeStruct((B, D), x.dtype),
        compiler_params=pltpu.CompilerParams(
            dimension_semantics=("parallel",),          # megacore-shardable on v7x
            vmem_limit_bytes=vmem_limit),
        cost_estimate=pl.CostEstimate(
            flops=2 * B * D,
            transcendentals=0,
            bytes_accessed=2 * B * D * itemsize + 2 * D * 4),
    )(x, params)

    # logabsdet of an elementwise-affine cascade is data-independent: the same
    # scalar sum_k sum_d log_scale_k[d] for every sample. Accumulate in f32.
    lad = jnp.full((B,), jnp.sum(log_scales.astype(jnp.float32)), jnp.float32)
    return y, lad


if __name__ == "__main__":
    key = jax.random.PRNGKey(0)
    B, D, K = 8, 128, 3                                 # batch, features, #transforms

    k1, k2, k3 = jax.random.split(key, 3)
    x = jax.random.normal(k1, (B, D), dtype=jnp.float32)
    # Deterministic synthetic parameters for the K constituent transforms.
    log_scales = 0.1 * jax.random.normal(k2, (K, D), dtype=jnp.float32)
    shifts = 0.1 * jax.random.normal(k3, (K, D), dtype=jnp.float32)

    y, lad = composite_transform(x, log_scales, shifts)
    jax.block_until_ready((y, lad))

    # Pure-JAX reference of the cascade (mirrors CompositeTransform._cascade).
    y_ref = x
    lad_ref = jnp.zeros((B,), jnp.float32)
    for k in range(K):
        y_ref = y_ref * jnp.exp(log_scales[k]) + shifts[k]
        lad_ref = lad_ref + jnp.sum(log_scales[k])

    assert jnp.allclose(y, y_ref, atol=1e-5, rtol=1e-5), "outputs mismatch"
    assert jnp.allclose(lad, lad_ref, atol=1e-4, rtol=1e-5), "logabsdet mismatch"

    # TODO(synk): full_jacobian=True path (torch.bmm of per-transform Jacobians)
    # and inverse() are not implemented; only the logabsdet-accumulating forward
    # is ported. `context` is ignored (the synthetic affine transforms take none).
    print("KERNEL_OK")
</pallas_src>

<mosaic_0001>
module attributes {stable_mosaic.version = 11 : i64} {
  func.func @composite_kernel(%arg0: i32, %arg1: memref<8x128xf32, #tpu.memory_space<vmem>>, %arg2: memref<2x128xf32, #tpu.memory_space<vmem>>, %arg3: memref<8x128xf32, #tpu.memory_space<vmem>>) attributes {dimension_semantics = [#tpu.dimension_semantics<parallel>], iteration_bounds = array<i64: 1>, scalar_prefetch = 0 : i64, scratch_operands = 0 : i64, tpu.core_type = #tpu.core_type<tc>, window_params = [{transform_indices = @transform_0, window_bounds = array<i64: 8, 128>}, {pipeline_mode = #tpu.pipeline_mode<synchronous>, transform_indices = @transform_1, window_bounds = array<i64: 2, 128>}, {transform_indices = @transform_2, window_bounds = array<i64: 8, 128>}]} {
    %c0 = arith.constant 0 : index
    %c0_0 = arith.constant 0 : index
    %0 = vector.load %arg2[%c0, %c0_0] : memref<2x128xf32, #tpu.memory_space<vmem>>, vector<1x128xf32>
    %c1 = arith.constant 1 : index
    %c0_1 = arith.constant 0 : index
    %1 = vector.load %arg2[%c1, %c0_1] : memref<2x128xf32, #tpu.memory_space<vmem>>, vector<1x128xf32>
    %c0_2 = arith.constant 0 : index
    %c0_3 = arith.constant 0 : index
    %2 = vector.load %arg1[%c0_2, %c0_3] : memref<8x128xf32, #tpu.memory_space<vmem>>, vector<8x128xf32>
    %3 = vector.broadcast %0 : vector<1x128xf32> to vector<8x128xf32>
    %4 = arith.mulf %2, %3 : vector<8x128xf32>
    %5 = vector.broadcast %1 : vector<1x128xf32> to vector<8x128xf32>
    %6 = arith.addf %4, %5 : vector<8x128xf32>
    %c0_4 = arith.constant 0 : index
    %c0_5 = arith.constant 0 : index
    %7 = vector.load %arg3[%c0_4, %c0_5] : memref<8x128xf32, #tpu.memory_space<vmem>>, vector<8x128xf32>
    tpu.vector_store %arg3[%c0_4, %c0_5], %6 {strides = array<i32>} : memref<8x128xf32, #tpu.memory_space<vmem>>, vector<8x128xf32>,
    return
  }
  func.func @transform_0(%arg0: i32) -> (i32, i32) {
    %c0_i32 = arith.constant 0 : i32
    %c0_i32_0 = arith.constant 0 : i32
    return %arg0, %c0_i32 : i32, i32
  }
  func.func @transform_1(%arg0: i32) -> (i32, i32) {
    %c0_i32 = arith.constant 0 : i32
    %c0_i32_0 = arith.constant 0 : i32
    %c0_i32_1 = arith.constant 0 : i32
    return %c0_i32, %c0_i32_0 : i32, i32
  }
  func.func @transform_2(%arg0: i32) -> (i32, i32) {
    %c0_i32 = arith.constant 0 : i32
    %c0_i32_0 = arith.constant 0 : i32
    return %arg0, %c0_i32 : i32, i32
  }
}

</mosaic_0001>

<llo_original>
// kernel: tpu_custom_call.1
$region0: #{tpu_custom_call.1}
  #allocation0 [shape = 'u32[]', space=smem, size = 0x4, offset = 0x4, fixed_abs, tag = 'smem constant byte address 0x4 - core index']
  #allocation1 [shape = 'u32[72,128]{1,0:T(1,128)}', space=vmem, size = 0x9000, scoped, tag = 'internal scratch']
  %s0 = inlined_call_operand.hbm [shape: f32[8,128], index: 0, kind: input, shape index: {}]
  %s1 = inlined_call_operand.hbm [shape: f32[2,128], index: 1, kind: input, shape index: {}]
  %s2 = inlined_call_operand.hbm [shape: f32[8,128], index: 2, kind: output, shape index: {}]
  %s3 = sld [smem:[#allocation0]]
  $region26: #{tpu_custom_call.1} parent=0
    _
  %s5 = ssub.s32 1, %s3
  %s6 = scalar_select 0, %s5, %s3
  $region1: #{tpu_custom_call.1} parent=0
    #allocation2 [shape = 'u8[4096]{0}', space=vmem, size = 0x1000, scoped, tag = 'input window, operand 0, single buffered']
    #allocation3 [shape = 's32[1]{0}', space=sflag, size = 0x4, scoped, tag = 'scoped memory for tpu_custom_call.1']
    #allocation4 [shape = 's32[1]{0}', space=sflag, size = 0x4, scoped, tag = 'scoped memory for tpu_custom_call.1']
    #allocation5 [shape = 'u8[1024]{0}', space=vmem, size = 0x400, scoped, tag = 'input window, operand 1, single buffered']
    #allocation6 [shape = 's32[1]{0}', space=sflag, size = 0x4, scoped, tag = 'scoped memory for tpu_custom_call.1']
    #allocation7 [shape = 'u8[4096]{0}', space=vmem, size = 0x1000, scoped, tag = 'output window, operand 0, single buffered']
    %7 = vsyncpa [#allocation3], 0
    %8 = vsyncpa [#allocation6], 0
    %9 = vsyncpa [#allocation4], 0
    // Predicated region
    $region2: #{tpu_custom_call.1} parent=1 // pred_check
      _
    $region3: #{tpu_custom_call.1} parent=1 // pred_check_branch
      %11 = sbr.rel (0) target = $region5
    $region4: #{tpu_custom_call.1} parent=1 // pred_region
      %13 = vsyncadd [#allocation3], 0
      %s15 = sshll.u32 %s0, 4
      %s16 = int_to_ptr.hbm [resolvable:$true] %s15
      %s17 = sshll.u32 [#allocation2], 4
      %s18 = int_to_ptr.vmem [resolvable:$true] %s17
      %20 = dma.hbm_to_vmem [thread:$0]  %s16, 128, %s18, [#allocation3]
    $region5: #{tpu_custom_call.1} parent=1 // pred_fallthru
      _
    // Predicated region
    $region6: #{tpu_custom_call.1} parent=1 // pred_check
      _
    $region7: #{tpu_custom_call.1} parent=1 // pred_check_branch
      %22 = sbr.rel (0) target = $region9
    $region8: #{tpu_custom_call.1} parent=1 // pred_region
      %24 = vsyncadd [#allocation6], 0
      %s26 = sshll.u32 %s1, 4
      %s27 = int_to_ptr.hbm [resolvable:$true] %s26
      %s28 = sshll.u32 [#allocation5], 4
      %s29 = int_to_ptr.vmem [resolvable:$true] %s28
      %31 = dma.hbm_to_vmem [thread:$0]  %s27, 32, %s29, [#allocation6]
    $region9: #{tpu_custom_call.1} parent=1 // pred_fallthru
      _
    // Predicated region
    $region10: #{tpu_custom_call.1} parent=1 // pred_check
      _
    $region11: #{tpu_custom_call.1} parent=1 // pred_check_branch
      %33 = sbr.rel (0) target = $region13
    $region12: #{tpu_custom_call.1} parent=1 // pred_region
      %35 = dma.done [#allocation3], 128
    $region13: #{tpu_custom_call.1} parent=1 // pred_fallthru
      _
    // Predicated region
    $region14: #{tpu_custom_call.1} parent=1 // pred_check
      _
    $region15: #{tpu_custom_call.1} parent=1 // pred_check_branch
      %37 = sbr.rel (0) target = $region17
    $region16: #{tpu_custom_call.1} parent=1 // pred_region
      %39 = dma.done [#allocation6], 32
    $region17: #{tpu_custom_call.1} parent=1 // pred_fallthru
      _
    %v40 = vld [vmem:[#allocation5] sm:$0x1]
    %v41 = vld [vmem:[#allocation5 + $0x1] sm:$0x1]
    %v42 = vld [vmem:[#allocation2] sm:$0xff]
    %v43 = vperm.slane %v40, 0
    %v44 = vmul.f32 %v42, %v43
    %v45 = vperm.slane %v41, 0
    %v46 = vadd.f32 %v44, %v45
    %47 = vst [vmem:[#allocation7] sm:$0xff] %v46
    // Predicated region
    $region18: #{tpu_custom_call.1} parent=1 // pred_check
      _
    $region19: #{tpu_custom_call.1} parent=1 // pred_check_branch
      %49 = sbr.rel (0) target = $region21
    $region20: #{tpu_custom_call.1} parent=1 // pred_region
      %51 = vsyncadd [#allocation4], 0
      %s53 = sshll.u32 [#allocation7], 4
      %s54 = int_to_ptr.vmem [resolvable:$true] %s53
      %s55 = sshll.u32 %s2, 4
      %s56 = int_to_ptr.hbm [resolvable:$true] %s55
      %58 = dma.vmem_to_hbm [thread:$0]  %s54, 128, %s56, [#allocation4]
    $region21: #{tpu_custom_call.1} parent=1 // pred_fallthru
      _
    // Predicated region
    $region22: #{tpu_custom_call.1} parent=1 // pred_check
      _
    $region23: #{tpu_custom_call.1} parent=1 // pred_check_branch
      %60 = sbr.rel (0) target = $region25
    $region24: #{tpu_custom_call.1} parent=1 // pred_region
      %62 = dma.done [#allocation4], 128
    $region25: #{tpu_custom_call.1} parent=1 // pred_fallthru
      _
    %63 = vsyncpa [#allocation3], 1
    %64 = vsyncpa [#allocation6], 1
    %65 = vsyncpa [#allocation4], 1

</llo_original>
